<compile_context>
chip_gen: v7x
topology: tpu7x:2x2x1
jax: 0.10.0
libtpu: 0.0.40
codegen_flags: <defaults>
</compile_context>

<pallas_src>
import jax
import jax.numpy as jnp
from jax.experimental import pallas as pl
from jax.experimental.pallas import tpu as pltpu


def _learnable_weights_kernel(w_ref, x1_ref, x2_ref, o_ref):
    # w_ref: scalar-prefetched SMEM (2,) float32 -> [w1, w2].
    # x1_ref / x2_ref / o_ref: lane-dense VMEM tiles of one row-block.
    w1 = w_ref[0]
    w2 = w_ref[1]
    x1 = x1_ref[...].astype(jnp.float32)
    x2 = x2_ref[...].astype(jnp.float32)
    o_ref[...] = (x1 * w1 + x2 * w2).astype(o_ref.dtype)


def _sublane_align(itemsize):
    # 8 sublanes for 32-bit, 16 for 16-bit, 32 for 8-bit packed dtypes.
    return max(8, 32 // itemsize)


def _pick_lanes(n):
    # Largest lane width (multiple of 128) dividing n -> zero-copy wrapper path.
    for lanes in (512, 256, 128):
        if n % lanes == 0:
            return lanes
    return 128


def _chip_params():
    """Generation-aware (block_bytes, two_tensorcores, vmem_capacity)."""
    try:
        vmem_bytes = int(pltpu.get_tpu_info().vmem_capacity_bytes)
    except Exception:
        vmem_bytes = 64 << 20              # conservative fallback
    if vmem_bytes >= (96 << 20):
        # v5e / v6e: 128 MiB VMEM, single TensorCore -> big 8 MiB blocks.
        return (8 << 20), False, vmem_bytes
    # v7x-class: 64 MiB VMEM per TC, 2 TensorCores -> 4 MiB blocks, split work.
    return (4 << 20), True, vmem_bytes


def learnable_weights_forward(x1, x2, w1, w2):
    """out = x1 * w1 + x2 * w2 (elementwise), any matching shape."""
    assert x1.shape == x2.shape and x1.dtype == x2.dtype
    assert jnp.issubdtype(x1.dtype, jnp.floating), "floating-point inputs only"
    # NOTE: output keeps the input dtype; PyTorch would promote bf16 * f32
    # parameter to f32 output.  For the reference f32 module they coincide.
    orig_shape = x1.shape
    dtype = x1.dtype
    n = x1.size
    itemsize = jnp.dtype(dtype).itemsize
    align = _sublane_align(itemsize)
    block_bytes, two_core, vmem_bytes = _chip_params()

    lanes = _pick_lanes(n)
    rows = pl.cdiv(n, lanes)
    total = rows * lanes

    # Flatten to a lane-dense (rows, lanes) slab.  At most one tiny pad per
    # input (to a multiple of `lanes`), and none at all when n % lanes == 0.
    x1f = x1.reshape(-1)
    x2f = x2.reshape(-1)
    if total != n:
        x1f = jnp.pad(x1f, (0, total - n))
        x2f = jnp.pad(x2f, (0, total - n))
    x1f = x1f.reshape(rows, lanes)
    x2f = x2f.reshape(rows, lanes)

    # Row-block size ~ block_bytes, sublane-aligned.  The last grid step may be
    # ragged: Pallas masks out-of-bounds writes and OOB reads are don't-care
    # for an elementwise op, so `rows` is never padded up to the tile.
    tile_rows = max(align, (block_bytes // (lanes * itemsize)) // align * align)
    if rows <= align:
        tile_rows = rows                 # single full-dim block (tiny input)
    elif rows <= tile_rows:
        if two_core and rows >= 2 * align:
            # v7x only: split into two aligned row-blocks so both TensorCores
            # get work; the ragged second block needs no padding.
            tile_rows = ((pl.cdiv(rows, 2) + align - 1) // align) * align
        else:
            tile_rows = rows             # one full-dim block on 1-TC chips
    grid = (pl.cdiv(rows, tile_rows),)

    # Learnable scalars stay float32 (nn.Parameter semantics), prefetched to SMEM.
    w = jnp.stack([jnp.asarray(w1, jnp.float32).reshape(()),
                   jnp.asarray(w2, jnp.float32).reshape(())])

    # VMEM budget: 3 arrays x 2 pipeline buffers x block + compiler headroom,
    # capped below physical VMEM.
    block_bytes_actual = tile_rows * lanes * itemsize
    vmem_limit = 6 * block_bytes_actual + (4 << 20)
    vmem_limit = int(min(max(vmem_limit, 16 << 20), vmem_bytes - (8 << 20)))

    out = pl.pallas_call(
        _learnable_weights_kernel,
        out_shape=jax.ShapeDtypeStruct((rows, lanes), dtype),
        grid_spec=pltpu.PrefetchScalarGridSpec(
            num_scalar_prefetch=1,
            grid=grid,
            in_specs=[
                pl.BlockSpec((tile_rows, lanes), lambda i, w_ref: (i, 0)),
                pl.BlockSpec((tile_rows, lanes), lambda i, w_ref: (i, 0)),
            ],
            out_specs=pl.BlockSpec((tile_rows, lanes), lambda i, w_ref: (i, 0)),
        ),
        compiler_params=pltpu.CompilerParams(
            dimension_semantics=("parallel",),
            vmem_limit_bytes=vmem_limit),
    )(w, x1f, x2f)

    if total != n:
        return out.reshape(-1)[:n].reshape(orig_shape)
    return out.reshape(orig_shape)


if __name__ == "__main__":
    key = jax.random.PRNGKey(0)
    k1, k2 = jax.random.split(key)

    # NCHW inputs, as the fusion module would receive feature maps.
    x1 = jax.random.normal(k1, (2, 4, 16, 16), dtype=jnp.float32)
    x2 = jax.random.normal(k2, (2, 4, 16, 16), dtype=jnp.float32)

    # Deterministic parameter init matching nn.Parameter(torch.tensor([0.5])).
    w1 = jnp.float32(0.5)
    w2 = jnp.float32(0.5)

    out = learnable_weights_forward(x1, x2, w1, w2)
    out = jax.block_until_ready(out)

    ref = x1 * w1 + x2 * w2
    assert out.shape == x1.shape
    assert jnp.allclose(out, ref, atol=1e-6), "mismatch vs reference"

    print("KERNEL_OK")
</pallas_src>

<mosaic_0001>
module attributes {stable_mosaic.version = 11 : i64} {
  func.func @_learnable_weights_kernel(%arg0: i32, %arg1: memref<2xf32, #tpu.memory_space<smem>>, %arg2: memref<4x512xf32, #tpu.memory_space<vmem>>, %arg3: memref<4x512xf32, #tpu.memory_space<vmem>>, %arg4: memref<4x512xf32, #tpu.memory_space<vmem>>) attributes {dimension_semantics = [#tpu.dimension_semantics<parallel>], iteration_bounds = array<i64: 1>, scalar_prefetch = 1 : i64, scratch_operands = 0 : i64, tpu.core_type = #tpu.core_type<tc>, window_params = [{transform_indices = @transform_0, window_bounds = array<i64: 4, 512>}, {transform_indices = @transform_1, window_bounds = array<i64: 4, 512>}, {transform_indices = @transform_2, window_bounds = array<i64: 4, 512>}]} {
    %c0 = arith.constant 0 : index
    %0 = memref.load %arg1[%c0] : memref<2xf32, #tpu.memory_space<smem>>
    %c1 = arith.constant 1 : index
    %1 = memref.load %arg1[%c1] : memref<2xf32, #tpu.memory_space<smem>>
    %c0_0 = arith.constant 0 : index
    %c0_1 = arith.constant 0 : index
    %2 = vector.load %arg2[%c0_0, %c0_1] : memref<4x512xf32, #tpu.memory_space<vmem>>, vector<4x512xf32>
    %c0_2 = arith.constant 0 : index
    %c0_3 = arith.constant 0 : index
    %3 = vector.load %arg3[%c0_2, %c0_3] : memref<4x512xf32, #tpu.memory_space<vmem>>, vector<4x512xf32>
    %4 = vector.broadcast %0 : f32 to vector<4x512xf32>
    %5 = arith.mulf %2, %4 : vector<4x512xf32>
    %6 = vector.broadcast %1 : f32 to vector<4x512xf32>
    %7 = arith.mulf %3, %6 : vector<4x512xf32>
    %8 = arith.addf %5, %7 : vector<4x512xf32>
    %c0_4 = arith.constant 0 : index
    %c0_5 = arith.constant 0 : index
    %9 = vector.load %arg4[%c0_4, %c0_5] : memref<4x512xf32, #tpu.memory_space<vmem>>, vector<4x512xf32>
    tpu.vector_store %arg4[%c0_4, %c0_5], %8 {strides = array<i32>} : memref<4x512xf32, #tpu.memory_space<vmem>>, vector<4x512xf32>,
    return
  }
  func.func @transform_0(%arg0: i32, %arg1: memref<2xf32, #tpu.memory_space<smem>>) -> (i32, i32) {
    %c0_i32 = arith.constant 0 : i32
    %c0_i32_0 = arith.constant 0 : i32
    return %arg0, %c0_i32 : i32, i32
  }
  func.func @transform_1(%arg0: i32, %arg1: memref<2xf32, #tpu.memory_space<smem>>) -> (i32, i32) {
    %c0_i32 = arith.constant 0 : i32
    %c0_i32_0 = arith.constant 0 : i32
    return %arg0, %c0_i32 : i32, i32
  }
  func.func @transform_2(%arg0: i32, %arg1: memref<2xf32, #tpu.memory_space<smem>>) -> (i32, i32) {
    %c0_i32 = arith.constant 0 : i32
    %c0_i32_0 = arith.constant 0 : i32
    return %arg0, %c0_i32 : i32, i32
  }
}

</mosaic_0001>

<llo_original>
// kernel: tpu_custom_call.1
$region0: #{tpu_custom_call.1}
  #allocation0 [shape = 'u32[]', space=smem, size = 0x4, offset = 0x4, fixed_abs, tag = 'smem constant byte address 0x4 - core index']
  #allocation1 [shape = 'u32[144,128]{1,0:T(1,128)}', space=vmem, size = 0x12000, scoped, tag = 'internal scratch']
  #allocation2 [shape = 's32[1]{0}', space=sflag, size = 0x4, scoped, tag = 'scoped memory for tpu_custom_call.1']
  #allocation3 [shape = 'u8[512]{0}', space=smem, size = 0x200, scoped, tag = 'prefetched SMEM operand 0']
  %s0 = inlined_call_operand.hbm [shape: f32[2], index: 0, kind: input, shape index: {}]
  %s1 = inlined_call_operand.hbm [shape: f32[4,512], index: 1, kind: input, shape index: {}]
  %s2 = inlined_call_operand.hbm [shape: f32[4,512], index: 2, kind: input, shape index: {}]
  %s3 = inlined_call_operand.hbm [shape: f32[4,512], index: 3, kind: output, shape index: {}]
  %s4 = sld [smem:[#allocation0]]
  $region26: #{tpu_custom_call.1} parent=0
    _
  %s6 = ssub.s32 1, %s4
  %s7 = scalar_select 0, %s6, %s4
  %9 = dma.hbm_to_smem %s0, 16, [#allocation3], [#allocation2]
  %10 = dma.done [#allocation2], 16
  %11 = sfence
  $region1: #{tpu_custom_call.1} parent=0
    #allocation4 [shape = 'u8[8192]{0}', space=vmem, size = 0x2000, scoped, tag = 'input window, operand 1, single buffered']
    #allocation5 [shape = 's32[1]{0}', space=sflag, size = 0x4, scoped, tag = 'scoped memory for tpu_custom_call.1']
    #allocation6 [shape = 's32[1]{0}', space=sflag, size = 0x4, scoped, tag = 'scoped memory for tpu_custom_call.1']
    #allocation7 [shape = 'u8[8192]{0}', space=vmem, size = 0x2000, scoped, tag = 'input window, operand 2, single buffered']
    #allocation8 [shape = 's32[1]{0}', space=sflag, size = 0x4, scoped, tag = 'scoped memory for tpu_custom_call.1']
    #allocation9 [shape = 'u8[8192]{0}', space=vmem, size = 0x2000, scoped, tag = 'output window, operand 0, single buffered']
    %12 = vsyncpa [#allocation5], 0
    %13 = vsyncpa [#allocation8], 0
    %14 = vsyncpa [#allocation6], 0
    // Predicated region
    $region2: #{tpu_custom_call.1} parent=1 // pred_check
      _
    $region3: #{tpu_custom_call.1} parent=1 // pred_check_branch
      %16 = sbr.rel (0) target = $region5
    $region4: #{tpu_custom_call.1} parent=1 // pred_region
      %s18 = ssub.s32 256, 256
      %19 = vsyncadd [#allocation5], %s18
      %s21 = sshll.u32 [#allocation4], 4
      %s22 = int_to_ptr.vmem [resolvable:$true] %s21
      %24 = dma.hbm_to_vmem [thread:$0]  %s1, 256, %s22, [#allocation5]
    $region5: #{tpu_custom_call.1} parent=1 // pred_fallthru
      _
    // Predicated region
    $region6: #{tpu_custom_call.1} parent=1 // pred_check
      _
    $region7: #{tpu_custom_call.1} parent=1 // pred_check_branch
      %26 = sbr.rel (0) target = $region9
    $region8: #{tpu_custom_call.1} parent=1 // pred_region
      %s28 = ssub.s32 256, 256
      %29 = vsyncadd [#allocation8], %s28
      %s31 = sshll.u32 [#allocation7], 4
      %s32 = int_to_ptr.vmem [resolvable:$true] %s31
      %34 = dma.hbm_to_vmem [thread:$0]  %s2, 256, %s32, [#allocation8]
    $region9: #{tpu_custom_call.1} parent=1 // pred_fallthru
      _
    // Predicated region
    $region10: #{tpu_custom_call.1} parent=1 // pred_check
      _
    $region11: #{tpu_custom_call.1} parent=1 // pred_check_branch
      %36 = sbr.rel (0) target = $region13
    $region12: #{tpu_custom_call.1} parent=1 // pred_region
      %37 = dma.done [#allocation5], 256
    $region13: #{tpu_custom_call.1} parent=1 // pred_fallthru
      _
    // Predicated region
    $region14: #{tpu_custom_call.1} parent=1 // pred_check
      _
    $region15: #{tpu_custom_call.1} parent=1 // pred_check_branch
      %39 = sbr.rel (0) target = $region17
    $region16: #{tpu_custom_call.1} parent=1 // pred_region
      %40 = dma.done [#allocation8], 256
    $region17: #{tpu_custom_call.1} parent=1 // pred_fallthru
      _
    %s41 = sld [smem:[#allocation3]]
    %s42 = sld [smem:[#allocation3 + $0x1]]
    %v43 = vld [vmem:[#allocation4] sm:$0xff]
    %v44 = vld [vmem:[#allocation4 + $0x8] sm:$0xff]
    %v45 = vld [vmem:[#allocation7] sm:$0xff]
    %v46 = vld [vmem:[#allocation7 + $0x8] sm:$0xff]
    %v47 = vstv %s41
    %v48 = vmul.f32 %v43, %v47
    %v49 = vmul.f32 %v44, %v47
    %v50 = vstv %s42
    %v51 = vmul.f32 %v45, %v50
    %v52 = vmul.f32 %v46, %v50
    %v53 = vadd.f32 %v48, %v51
    %v54 = vadd.f32 %v49, %v52
    %55 = vst [vmem:[#allocation9] sm:$0xff] %v53
    %56 = vst [vmem:[#allocation9 + $0x8] sm:$0xff] %v54
    // Predicated region
    $region18: #{tpu_custom_call.1} parent=1 // pred_check
      _
    $region19: #{tpu_custom_call.1} parent=1 // pred_check_branch
      %58 = sbr.rel (0) target = $region21
    $region20: #{tpu_custom_call.1} parent=1 // pred_region
      %s60 = ssub.s32 256, 256
      %61 = vsyncadd [#allocation6], %s60
      %s63 = sshll.u32 [#allocation9], 4
      %s64 = int_to_ptr.vmem [resolvable:$true] %s63
      %66 = dma.vmem_to_hbm [thread:$0]  %s64, 256, %s3, [#allocation6]
    $region21: #{tpu_custom_call.1} parent=1 // pred_fallthru
      _
    // Predicated region
    $region22: #{tpu_custom_call.1} parent=1 // pred_check
      _
    $region23: #{tpu_custom_call.1} parent=1 // pred_check_branch
      %68 = sbr.rel (0) target = $region25
    $region24: #{tpu_custom_call.1} parent=1 // pred_region
      %69 = dma.done [#allocation6], 256
    $region25: #{tpu_custom_call.1} parent=1 // pred_fallthru
      _
    %70 = vsyncpa [#allocation5], 1
    %71 = vsyncpa [#allocation8], 1
    %72 = vsyncpa [#allocation6], 1

</llo_original>
